<compile_context>
chip_gen: v6e
topology: v6e:2x2x1
jax: 0.10.0
libtpu: 0.0.40
codegen_flags: <defaults>
</compile_context>

<pallas_src>
import functools

import jax
import jax.numpy as jnp
from jax.experimental import pallas as pl
from jax.experimental.pallas import tpu as pltpu

_LANES = 128


def _cb_focal_kernel(ab_ref, logits_ref, idx_ref, out_ref, *, gamma, num_tones):
    x = logits_ref[...]                       # (TR, 128) f32
    idx = idx_ref[...]                        # (TR, 128) i32, pad = 2*num_tones

    parity = jnp.bitwise_and(idx, 1)          # target in {0, 1}
    tone = jnp.right_shift(idx, 1)            # skin tone (== num_tones on pad)
    t_f = parity.astype(jnp.float32)

    # z = (1 - 2t) * x ;  (1 - pt) = sigmoid(z) ;  bce = softplus(z)
    z = (1.0 - 2.0 * t_f) * x
    e = jnp.exp(-jnp.abs(z))                  # single transcendental per elem
    inv = 1.0 / (1.0 + e)
    one_minus_pt = jnp.where(z >= 0.0, inv, e * inv)      # sigmoid(z)
    bce = jnp.maximum(z, 0.0) + jnp.log1p(e)               # stable softplus

    g = float(gamma)
    if g == int(g) and 0 <= int(g) <= 8:      # integer gamma: pure VALU muls
        gi = int(g)
        if gi == 0:
            focal = jnp.ones_like(one_minus_pt)
        else:
            focal = one_minus_pt
            for _ in range(gi - 1):
                focal = focal * one_minus_pt
    else:                                     # general gamma: EUP pow
        focal = one_minus_pt ** g

    # alpha[tone, target] = base[tone] + target * delta[tone]
    # ab_ref layout: [base_0, delta_0, base_1, delta_1, ...]
    base = jnp.zeros_like(x)
    delta = jnp.zeros_like(x)
    for k in range(num_tones):
        sel = tone == k
        base = jnp.where(sel, ab_ref[2 * k], base)
        delta = jnp.where(sel, ab_ref[2 * k + 1], delta)
    alpha = base + t_f * delta                # pad lanes: alpha == 0

    loss = alpha * focal * bce
    # Lane-dense partial sum for this block; sublane reduce happens once per
    # block (no per-element scalar RMW, no cross-lane reduce in the kernel).
    out_ref[...] = jnp.sum(loss, axis=0, keepdims=True).reshape(1, 1, _LANES)


def class_balanced_focal_loss(logits, targets, skin_tones, alphas,
                              gamma=2.0, block_rows=512):
    """Pallas forward pass. logits/targets/skin_tones: [B]; alphas: [T, 2]."""
    B = int(logits.shape[0])
    num_tones = int(alphas.shape[0])
    assert alphas.shape[1] == 2, "binary-target loss expects alphas[:, 2]"

    # Row/tile geometry: (R_pad, 128) lane-dense slab, TR-row blocks.
    rows = -(-B // _LANES)
    tr = min(int(block_rows), ((rows + 7) // 8) * 8)       # multiple of 8
    num_blocks = -(-rows // tr)
    rows_pad = num_blocks * tr
    bp = rows_pad * _LANES
    pad = bp - B

    logits_p = jnp.pad(logits.astype(jnp.float32), (0, pad)).reshape(
        rows_pad, _LANES)
    idx = 2 * skin_tones.astype(jnp.int32) + targets.astype(jnp.int32)
    idx_p = jnp.pad(idx, (0, pad),
                    constant_values=2 * num_tones).reshape(rows_pad, _LANES)

    # Flat [base_k, delta_k] table for the SMEM scalar-prefetch gather.
    alphas_f = alphas.astype(jnp.float32)
    base = alphas_f[:, 0]
    delta = alphas_f[:, 1] - alphas_f[:, 0]
    ab = jnp.stack([base, delta], axis=1).reshape(2 * num_tones)

    kernel = functools.partial(_cb_focal_kernel, gamma=float(gamma),
                               num_tones=num_tones)

    partials = pl.pallas_call(
        kernel,
        out_shape=jax.ShapeDtypeStruct((num_blocks, 1, _LANES), jnp.float32),
        grid_spec=pltpu.PrefetchScalarGridSpec(
            num_scalar_prefetch=1,
            grid=(num_blocks,),
            in_specs=[
                pl.BlockSpec((tr, _LANES), lambda i, ab_ref: (i, 0)),   # logits
                pl.BlockSpec((tr, _LANES), lambda i, ab_ref: (i, 0)),   # idx
            ],
            out_specs=pl.BlockSpec((1, 1, _LANES),
                                   lambda i, ab_ref: (i, 0, 0)),
        ),
        compiler_params=pltpu.CompilerParams(
            dimension_semantics=("parallel",),
            vmem_limit_bytes=32 * 1024 * 1024),
    )(ab, logits_p, idx_p)

    return jnp.sum(partials) / jnp.float32(B)


def build_alphas(counts, beta):
    """Deterministic stand-in for the metadata_df-derived alpha table.

    counts[tone, cls] = number of training samples for that (tone, class).
    weight = (1 - beta) / (1 - beta ** n)   (0 where count == 0, as in torch).
    """
    counts = counts.astype(jnp.float32)
    effective_num = 1.0 - jnp.power(jnp.float32(beta), counts)
    w = (1.0 - beta) / jnp.where(effective_num > 0, effective_num, 1.0)
    return jnp.where(counts > 0, w, 0.0)


def reference_loss(logits, targets, skin_tones, alphas, gamma=2.0):
    """Plain-JAX reference matching the PyTorch forward exactly."""
    logits = logits.astype(jnp.float32)
    targets_f = targets.astype(jnp.float32)
    probs = jax.nn.sigmoid(logits)
    pt = probs * targets_f + (1.0 - probs) * (1.0 - targets_f)
    focal = (1.0 - pt) ** gamma
    sample_alphas = alphas[skin_tones.astype(jnp.int32),
                           targets.astype(jnp.int32)]
    bce = (jnp.maximum(logits, 0.0) - logits * targets_f
           + jnp.log1p(jnp.exp(-jnp.abs(logits))))
    return jnp.mean(sample_alphas * focal * bce)


if __name__ == "__main__":
    key = jax.random.PRNGKey(0)
    k1, k2, k3 = jax.random.split(key, 3)

    B = 256             # batch of per-sample binary logits
    num_tones = 6       # skin-tone groups 0..5
    beta = 0.9999
    gamma = 2.0

    # Deterministic synthetic per-(tone, class) sample counts (metadata_df stand-in).
    counts = jnp.array([[500, 20],
                        [300, 15],
                        [800, 40],
                        [120,  8],
                        [ 60,  5],
                        [ 30,  3]], dtype=jnp.int32)
    alphas = build_alphas(counts, beta)          # [num_tones, 2]

    logits = jax.random.normal(k1, (B,), dtype=jnp.float32) * 2.0
    targets = jax.random.bernoulli(k2, p=0.3, shape=(B,)).astype(jnp.float32)
    skin_tones = jax.random.randint(k3, (B,), 0, num_tones, dtype=jnp.int32)

    loss = class_balanced_focal_loss(logits, targets, skin_tones, alphas,
                                     gamma=gamma)
    loss = jax.block_until_ready(loss)

    ref = jax.block_until_ready(
        reference_loss(logits, targets, skin_tones, alphas, gamma=gamma))
    assert jnp.allclose(loss, ref, rtol=1e-5, atol=1e-6), (loss, ref)

    print("KERNEL_OK")
</pallas_src>

<mosaic_0001>
module attributes {stable_mosaic.version = 11 : i64} {
  func.func @_cb_focal_kernel(%arg0: i32, %arg1: memref<12xf32, #tpu.memory_space<smem>>, %arg2: memref<8x128xf32, #tpu.memory_space<vmem>>, %arg3: memref<8x128xi32, #tpu.memory_space<vmem>>, %arg4: memref<1x1x128xf32, #tpu.memory_space<vmem>>) attributes {dimension_semantics = [#tpu.dimension_semantics<parallel>], iteration_bounds = array<i64: 1>, scalar_prefetch = 1 : i64, scratch_operands = 0 : i64, tpu.core_type = #tpu.core_type<tc>, window_params = [{transform_indices = @transform_0, window_bounds = array<i64: 8, 128>}, {transform_indices = @transform_1, window_bounds = array<i64: 8, 128>}, {transform_indices = @transform_2, window_bounds = array<i64: 1, 1, 128>}]} {
    %c0 = arith.constant 0 : index
    %c0_0 = arith.constant 0 : index
    %0 = vector.load %arg2[%c0, %c0_0] : memref<8x128xf32, #tpu.memory_space<vmem>>, vector<8x128xf32>
    %c0_1 = arith.constant 0 : index
    %c0_2 = arith.constant 0 : index
    %1 = vector.load %arg3[%c0_1, %c0_2] : memref<8x128xi32, #tpu.memory_space<vmem>>, vector<8x128xi32>
    %c1_i32 = arith.constant 1 : i32
    %2 = vector.broadcast %c1_i32 : i32 to vector<8x128xi32>
    %3 = arith.andi %1, %2 : vector<8x128xi32>
    %c1_i32_3 = arith.constant 1 : i32
    %4 = vector.broadcast %c1_i32_3 : i32 to vector<8x128xi32>
    %5 = arith.shrsi %1, %4 : vector<8x128xi32>
    %6 = arith.sitofp %3 : vector<8x128xi32> to vector<8x128xf32>
    %cst = arith.constant 2.000000e+00 : f32
    %7 = vector.broadcast %cst : f32 to vector<8x128xf32>
    %8 = arith.mulf %7, %6 : vector<8x128xf32>
    %cst_4 = arith.constant 1.000000e+00 : f32
    %9 = vector.broadcast %cst_4 : f32 to vector<8x128xf32>
    %10 = arith.subf %9, %8 : vector<8x128xf32>
    %11 = arith.mulf %10, %0 : vector<8x128xf32>
    %12 = math.absf %11 : vector<8x128xf32>
    %cst_5 = arith.constant 0.000000e+00 : f32
    %13 = vector.broadcast %cst_5 : f32 to vector<8x128xf32>
    %14 = arith.subf %13, %12 : vector<8x128xf32>
    %15 = math.exp %14 : vector<8x128xf32>
    %cst_6 = arith.constant 1.000000e+00 : f32
    %16 = vector.broadcast %cst_6 : f32 to vector<8x128xf32>
    %17 = arith.addf %16, %15 : vector<8x128xf32>
    %cst_7 = arith.constant 1.000000e+00 : f32
    %18 = vector.broadcast %cst_7 : f32 to vector<8x128xf32>
    %19 = arith.divf %18, %17 : vector<8x128xf32>
    %cst_8 = arith.constant 0.000000e+00 : f32
    %20 = vector.broadcast %cst_8 : f32 to vector<8x128xf32>
    %21 = arith.cmpf oge, %11, %20 : vector<8x128xf32>
    %22 = arith.mulf %15, %19 : vector<8x128xf32>
    %23 = arith.select %21, %19, %22 : vector<8x128xi1>, vector<8x128xf32>
    %cst_9 = arith.constant 0.000000e+00 : f32
    %24 = vector.broadcast %cst_9 : f32 to vector<8x128xf32>
    %25 = arith.maximumf %11, %24 : vector<8x128xf32>
    %26 = math.log1p %15 : vector<8x128xf32>
    %27 = arith.addf %25, %26 : vector<8x128xf32>
    %28 = arith.mulf %23, %23 : vector<8x128xf32>
    %cst_10 = arith.constant 0.000000e+00 : f32
    %29 = vector.broadcast %cst_10 : f32 to vector<8x128xf32>
    %cst_11 = arith.constant 0.000000e+00 : f32
    %30 = vector.broadcast %cst_11 : f32 to vector<8x128xf32>
    %c0_i32 = arith.constant 0 : i32
    %31 = vector.broadcast %c0_i32 : i32 to vector<8x128xi32>
    %32 = arith.cmpi eq, %5, %31 : vector<8x128xi32>
    %c0_12 = arith.constant 0 : index
    %33 = memref.load %arg1[%c0_12] : memref<12xf32, #tpu.memory_space<smem>>
    %34 = vector.broadcast %33 : f32 to vector<8x128xf32>
    %35 = arith.select %32, %34, %29 : vector<8x128xi1>, vector<8x128xf32>
    %c1 = arith.constant 1 : index
    %36 = memref.load %arg1[%c1] : memref<12xf32, #tpu.memory_space<smem>>
    %37 = vector.broadcast %36 : f32 to vector<8x128xf32>
    %38 = arith.select %32, %37, %30 : vector<8x128xi1>, vector<8x128xf32>
    %c1_i32_13 = arith.constant 1 : i32
    %39 = vector.broadcast %c1_i32_13 : i32 to vector<8x128xi32>
    %40 = arith.cmpi eq, %5, %39 : vector<8x128xi32>
    %c2 = arith.constant 2 : index
    %41 = memref.load %arg1[%c2] : memref<12xf32, #tpu.memory_space<smem>>
    %42 = vector.broadcast %41 : f32 to vector<8x128xf32>
    %43 = arith.select %40, %42, %35 : vector<8x128xi1>, vector<8x128xf32>
    %c3 = arith.constant 3 : index
    %44 = memref.load %arg1[%c3] : memref<12xf32, #tpu.memory_space<smem>>
    %45 = vector.broadcast %44 : f32 to vector<8x128xf32>
    %46 = arith.select %40, %45, %38 : vector<8x128xi1>, vector<8x128xf32>
    %c2_i32 = arith.constant 2 : i32
    %47 = vector.broadcast %c2_i32 : i32 to vector<8x128xi32>
    %48 = arith.cmpi eq, %5, %47 : vector<8x128xi32>
    %c4 = arith.constant 4 : index
    %49 = memref.load %arg1[%c4] : memref<12xf32, #tpu.memory_space<smem>>
    %50 = vector.broadcast %49 : f32 to vector<8x128xf32>
    %51 = arith.select %48, %50, %43 : vector<8x128xi1>, vector<8x128xf32>
    %c5 = arith.constant 5 : index
    %52 = memref.load %arg1[%c5] : memref<12xf32, #tpu.memory_space<smem>>
    %53 = vector.broadcast %52 : f32 to vector<8x128xf32>
    %54 = arith.select %48, %53, %46 : vector<8x128xi1>, vector<8x128xf32>
    %c3_i32 = arith.constant 3 : i32
    %55 = vector.broadcast %c3_i32 : i32 to vector<8x128xi32>
    %56 = arith.cmpi eq, %5, %55 : vector<8x128xi32>
    %c6 = arith.constant 6 : index
    %57 = memref.load %arg1[%c6] : memref<12xf32, #tpu.memory_space<smem>>
    %58 = vector.broadcast %57 : f32 to vector<8x128xf32>
    %59 = arith.select %56, %58, %51 : vector<8x128xi1>, vector<8x128xf32>
    %c7 = arith.constant 7 : index
    %60 = memref.load %arg1[%c7] : memref<12xf32, #tpu.memory_space<smem>>
    %61 = vector.broadcast %60 : f32 to vector<8x128xf32>
    %62 = arith.select %56, %61, %54 : vector<8x128xi1>, vector<8x128xf32>
    %c4_i32 = arith.constant 4 : i32
    %63 = vector.broadcast %c4_i32 : i32 to vector<8x128xi32>
    %64 = arith.cmpi eq, %5, %63 : vector<8x128xi32>
    %c8 = arith.constant 8 : index
    %65 = memref.load %arg1[%c8] : memref<12xf32, #tpu.memory_space<smem>>
    %66 = vector.broadcast %65 : f32 to vector<8x128xf32>
    %67 = arith.select %64, %66, %59 : vector<8x128xi1>, vector<8x128xf32>
    %c9 = arith.constant 9 : index
    %68 = memref.load %arg1[%c9] : memref<12xf32, #tpu.memory_space<smem>>
    %69 = vector.broadcast %68 : f32 to vector<8x128xf32>
    %70 = arith.select %64, %69, %62 : vector<8x128xi1>, vector<8x128xf32>
    %c5_i32 = arith.constant 5 : i32
    %71 = vector.broadcast %c5_i32 : i32 to vector<8x128xi32>
    %72 = arith.cmpi eq, %5, %71 : vector<8x128xi32>
    %c10 = arith.constant 10 : index
    %73 = memref.load %arg1[%c10] : memref<12xf32, #tpu.memory_space<smem>>
    %74 = vector.broadcast %73 : f32 to vector<8x128xf32>
    %75 = arith.select %72, %74, %67 : vector<8x128xi1>, vector<8x128xf32>
    %c11 = arith.constant 11 : index
    %76 = memref.load %arg1[%c11] : memref<12xf32, #tpu.memory_space<smem>>
    %77 = vector.broadcast %76 : f32 to vector<8x128xf32>
    %78 = arith.select %72, %77, %70 : vector<8x128xi1>, vector<8x128xf32>
    %79 = arith.mulf %6, %78 : vector<8x128xf32>
    %80 = arith.addf %75, %79 : vector<8x128xf32>
    %81 = arith.mulf %80, %28 : vector<8x128xf32>
    %82 = arith.mulf %81, %27 : vector<8x128xf32>
    %cst_14 = arith.constant dense<0.000000e+00> : vector<128xf32>
    %83 = vector.multi_reduction <add>, %82, %cst_14 [0] : vector<8x128xf32> to vector<128xf32>
    %84 = vector.shape_cast %83 : vector<128xf32> to vector<1x128xf32>
    %85 = vector.shape_cast %84 : vector<1x128xf32> to vector<1x1x128xf32>
    %c0_15 = arith.constant 0 : index
    %c0_16 = arith.constant 0 : index
    %c0_17 = arith.constant 0 : index
    %86 = vector.load %arg4[%c0_15, %c0_16, %c0_17] : memref<1x1x128xf32, #tpu.memory_space<vmem>>, vector<1x1x128xf32>
    tpu.vector_store %arg4[%c0_15, %c0_16, %c0_17], %85 {strides = array<i32>} : memref<1x1x128xf32, #tpu.memory_space<vmem>>, vector<1x1x128xf32>,
    return
  }
  func.func @transform_0(%arg0: i32, %arg1: memref<12xf32, #tpu.memory_space<smem>>) -> (i32, i32) {
    %c0_i32 = arith.constant 0 : i32
    %c0_i32_0 = arith.constant 0 : i32
    return %arg0, %c0_i32 : i32, i32
  }
  func.func @transform_1(%arg0: i32, %arg1: memref<12xf32, #tpu.memory_space<smem>>) -> (i32, i32) {
    %c0_i32 = arith.constant 0 : i32
    %c0_i32_0 = arith.constant 0 : i32
    return %arg0, %c0_i32 : i32, i32
  }
  func.func @transform_2(%arg0: i32, %arg1: memref<12xf32, #tpu.memory_space<smem>>) -> (i32, i32, i32) {
    %c0_i32 = arith.constant 0 : i32
    %c0_i32_0 = arith.constant 0 : i32
    %c0_i32_1 = arith.constant 0 : i32
    return %arg0, %c0_i32, %c0_i32_0 : i32, i32, i32
  }
}

</mosaic_0001>

<llo_original>
// kernel: tpu_custom_call.1
$region0: #{tpu_custom_call.1}
  #allocation0 [shape = 'u32[]', space=smem, size = 0x4, offset = 0x4, fixed_abs, tag = 'smem constant byte address 0x4 - core index']
  #allocation1 [shape = 'u32[144,128]{1,0:T(1,128)}', space=vmem, size = 0x12000, scoped, tag = 'internal scratch']
  #allocation2 [shape = 's32[1]{0}', space=sflag, size = 0x4, scoped, tag = 'scoped memory for tpu_custom_call.1']
  #allocation3 [shape = 'u8[512]{0}', space=smem, size = 0x200, scoped, tag = 'prefetched SMEM operand 0']
  %s0 = inlined_call_operand.hbm [shape: f32[12], index: 0, kind: input, shape index: {}]
  %s1 = inlined_call_operand.hbm [shape: f32[8,128], index: 1, kind: input, shape index: {}]
  %s2 = inlined_call_operand.hbm [shape: s32[8,128], index: 2, kind: input, shape index: {}]
  %s3 = inlined_call_operand.hbm [shape: f32[1,1,128], index: 3, kind: output, shape index: {}]
  %s4 = sld [smem:[#allocation0]]
  $region26: #{tpu_custom_call.1} parent=0
    _
  %s6 = ssub.s32 1, %s4
  %s7 = scalar_select 0, %s6, %s4
  %9 = dma.hbm_to_smem %s0, 16, [#allocation3], [#allocation2]
  %10 = dma.done [#allocation2], 16
  %11 = sfence
  $region1: #{tpu_custom_call.1} parent=0
    #allocation4 [shape = 'u8[4096]{0}', space=vmem, size = 0x1000, scoped, tag = 'input window, operand 1, single buffered']
    #allocation5 [shape = 's32[1]{0}', space=sflag, size = 0x4, scoped, tag = 'scoped memory for tpu_custom_call.1']
    #allocation6 [shape = 's32[1]{0}', space=sflag, size = 0x4, scoped, tag = 'scoped memory for tpu_custom_call.1']
    #allocation7 [shape = 'u8[4096]{0}', space=vmem, size = 0x1000, scoped, tag = 'input window, operand 2, single buffered']
    #allocation8 [shape = 's32[1]{0}', space=sflag, size = 0x4, scoped, tag = 'scoped memory for tpu_custom_call.1']
    #allocation9 [shape = 'u8[512]{0}', space=vmem, size = 0x400, scoped, tag = 'output window, operand 0, single buffered']
    %12 = vsyncpa [#allocation5], 0
    %13 = vsyncpa [#allocation8], 0
    %14 = vsyncpa [#allocation6], 0
    // Predicated region
    $region2: #{tpu_custom_call.1} parent=1 // pred_check
      _
    $region3: #{tpu_custom_call.1} parent=1 // pred_check_branch
      %16 = sbr.rel (0) target = $region5
    $region4: #{tpu_custom_call.1} parent=1 // pred_region
      %s18 = ssub.s32 128, 128
      %19 = vsyncadd [#allocation5], %s18
      %s21 = sshll.u32 [#allocation4], 4
      %s22 = int_to_ptr.vmem [resolvable:$true] %s21
      %24 = dma.hbm_to_vmem [thread:$0]  %s1, 128, %s22, [#allocation5]
    $region5: #{tpu_custom_call.1} parent=1 // pred_fallthru
      _
    // Predicated region
    $region6: #{tpu_custom_call.1} parent=1 // pred_check
      _
    $region7: #{tpu_custom_call.1} parent=1 // pred_check_branch
      %26 = sbr.rel (0) target = $region9
    $region8: #{tpu_custom_call.1} parent=1 // pred_region
      %s28 = ssub.s32 128, 128
      %29 = vsyncadd [#allocation8], %s28
      %s31 = sshll.u32 [#allocation7], 4
      %s32 = int_to_ptr.vmem [resolvable:$true] %s31
      %34 = dma.hbm_to_vmem [thread:$0]  %s2, 128, %s32, [#allocation8]
    $region9: #{tpu_custom_call.1} parent=1 // pred_fallthru
      _
    // Predicated region
    $region10: #{tpu_custom_call.1} parent=1 // pred_check
      _
    $region11: #{tpu_custom_call.1} parent=1 // pred_check_branch
      %36 = sbr.rel (0) target = $region13
    $region12: #{tpu_custom_call.1} parent=1 // pred_region
      %37 = dma.done [#allocation5], 128
    $region13: #{tpu_custom_call.1} parent=1 // pred_fallthru
      _
    // Predicated region
    $region14: #{tpu_custom_call.1} parent=1 // pred_check
      _
    $region15: #{tpu_custom_call.1} parent=1 // pred_check_branch
      %39 = sbr.rel (0) target = $region17
    $region16: #{tpu_custom_call.1} parent=1 // pred_region
      %40 = dma.done [#allocation8], 128
    $region17: #{tpu_custom_call.1} parent=1 // pred_fallthru
      _
    %v41 = vld [vmem:[#allocation4] sm:$0xff]
    %v42 = vld [vmem:[#allocation7] sm:$0xff]
    %v43 = vand.u32 %v42, 1
    %v44 = vshra.s32 %v42, 1
    %v45 = vcvt.s32.f32 %v43
    %v46 = vmul.f32 %v45, 2.0
    %v47 = vsub.f32 1.0, %v46
    %v48 = vmul.f32 %v47, %v41
    %v49 = vand.u32 2147483647, %v48
    %v50 = vsub.f32 0.0, %v49
    %v51 = vmul.f32 %v50, 1.442695
    %v52 = vpow.pop %v51
    %v53 = vadd.f32 %v52, 1.0
    %v54 = vrcp.pop %v53
    %v55 = vmul.f32 1.0, %v54
    %vm56 = vcmp.ge.f32.partialorder %v48, 0.0
    %v57 = vmul.f32 %v52, %v55
    %v58 = vsel %vm56, %v55, %v57
    %v59 = vmax.f32 %v48, 0.0
    %v60 = vadd.f32 %v52, 1.0
    %v61 = vlog2.pop %v60
    %v62 = vmul.f32 %v61, 0.6931472
    %v63 = vmul.f32 -0.5, %v52
    %v64 = vadd.f32 %v63, 1.0
    %v65 = vmul.f32 %v64, %v52
    %v66 = vand.u32 2147483647, %v52
    %vm67 = vcmp.lt.f32.partialorder %v66, 0.0004427343
    %v68 = vsel %vm67, %v65, %v62
    %v69 = vadd.f32 %v59, %v68
    %v70 = vmul.f32 %v58, %v58
    %vm71 = vcmp.eq.s32.totalorder %v44, 0
    %s72 = sld [smem:[#allocation3]]
    %v73 = vstv %s72
    %v74 = vsel %vm71, %v73, 0.0
    %s75 = sld [smem:[#allocation3 + $0x1]]
    %v76 = vstv %s75
    %v77 = vsel %vm71, %v76, 0.0
    %vm78 = vcmp.eq.s32.totalorder %v44, 1
    %s79 = sld [smem:[#allocation3 + $0x2]]
    %v80 = vstv %s79
    %v81 = vsel %vm78, %v80, %v74
    %s82 = sld [smem:[#allocation3 + $0x3]]
    %v83 = vstv %s82
    %v84 = vsel %vm78, %v83, %v77
    %vm85 = vcmp.eq.s32.totalorder %v44, 2
    %s86 = sld [smem:[#allocation3 + $0x4]]
    %v87 = vstv %s86
    %v88 = vsel %vm85, %v87, %v81
    %s89 = sld [smem:[#allocation3 + $0x5]]
    %v90 = vstv %s89
    %v91 = vsel %vm85, %v90, %v84
    %vm92 = vcmp.eq.s32.totalorder %v44, 3
    %s93 = sld [smem:[#allocation3 + $0x6]]
    %v94 = vstv %s93
    %v95 = vsel %vm92, %v94, %v88
    %s96 = sld [smem:[#allocation3 + $0x7]]
    %v97 = vstv %s96
    %v98 = vsel %vm92, %v97, %v91
    %vm99 = vcmp.eq.s32.totalorder %v44, 4
    %s100 = sld [smem:[#allocation3 + $0x8]]
    %v101 = vstv %s100
    %v102 = vsel %vm99, %v101, %v95
    %s103 = sld [smem:[#allocation3 + $0x9]]
    %v104 = vstv %s103
    %v105 = vsel %vm99, %v104, %v98
    %vm106 = vcmp.eq.s32.totalorder %v44, 5
    %s107 = sld [smem:[#allocation3 + $0xa]]
    %v108 = vstv %s107
    %v109 = vsel %vm106, %v108, %v102
    %s110 = sld [smem:[#allocation3 + $0xb]]
    %v111 = vstv %s110
    %v112 = vsel %vm106, %v111, %v105
    %v113 = vmul.f32 %v45, %v112
    %v114 = vadd.f32 %v109, %v113
    %v115 = vmul.f32 %v114, %v70
    %v116 = vmul.f32 %v115, %v69
    %v117 = vrot.slane %v116, 4
    %v118 = vadd.f32 %v116, %v117
    %v119 = vrot.slane %v118, 2
    %v120 = vadd.f32 %v118, %v119
    %v121 = vrot.slane %v120, 1
    %v122 = vadd.f32 %v120, %v121
    %123 = vst [vmem:[#allocation9] sm:$0x1] %v122
    // Predicated region
    $region18: #{tpu_custom_call.1} parent=1 // pred_check
      _
    $region19: #{tpu_custom_call.1} parent=1 // pred_check_branch
      %125 = sbr.rel (0) target = $region21
    $region20: #{tpu_custom_call.1} parent=1 // pred_region
      %s127 = ssub.s32 16, 16
      %128 = vsyncadd [#allocation6], %s127
      %s130 = sshll.u32 [#allocation9], 4
      %s131 = int_to_ptr.vmem [resolvable:$true] %s130
      %133 = dma.vmem_to_hbm [thread:$0]  %s131, 16, %s3, [#allocation6]
    $region21: #{tpu_custom_call.1} parent=1 // pred_fallthru
      _
    // Predicated region
    $region22: #{tpu_custom_call.1} parent=1 // pred_check
      _
    $region23: #{tpu_custom_call.1} parent=1 // pred_check_branch
      %135 = sbr.rel (0) target = $region25
    $region24: #{tpu_custom_call.1} parent=1 // pred_region
      %136 = dma.done [#allocation6], 16
    $region25: #{tpu_custom_call.1} parent=1 // pred_fallthru
      _
    %137 = vsyncpa [#allocation5], 1
    %138 = vsyncpa [#allocation8], 1
    %139 = vsyncpa [#allocation6], 1

</llo_original>
